<compile_context>
chip_gen: v7x
topology: tpu7x:2x2x1
jax: 0.10.0
libtpu: 0.0.40
codegen_flags: <defaults>
</compile_context>

<pallas_src>
import functools

import jax
import jax.numpy as jnp
from jax.experimental import pallas as pl
from jax.experimental.pallas import tpu as pltpu

EPS = 1e-5

width_mult_list = [0.25, 0.5, 0.75, 1.0]

_HW_TILE_CAP = 8192            # lanes per block (review: raise 2048 -> 4096-8192)
_TARGET_BLOCK_BYTES = 4 << 20  # ~4 MiB f32 x-block (2-8 MiB sweet spot)
_FUSED_WS_FACTOR = 7           # ~2x in + 2x out blocks + f32 work copies + temps


# ---------------------------------------------------------------------------
# Hardware / tile selection helpers
# ---------------------------------------------------------------------------
def _vmem_budget_bytes():
    """Scoped-VMEM limit to request: half of physical VMEM.

    v5e/v6e: 128 MiB physical -> 64 MiB; v7x: 64 MiB -> 32 MiB.  Falls back to
    the v7x-safe value if the query is unavailable.
    """
    cap = None
    try:
        cap = getattr(pltpu.get_tpu_info(), "vmem_capacity_bytes", None)
    except Exception:
        cap = None
    if not cap:
        cap = 64 * 1024 * 1024
    return int(cap) // 2


def _sublane_unit(dtype):
    """Channel-tile granularity: 8 for 4-byte dtypes, 16 for bf16, 32 for 1B."""
    return max(8, 32 // max(1, jnp.dtype(dtype).itemsize))


def _largest_divisor_tile(total, unit, cap):
    """Largest multiple of `unit` dividing `total` and <= cap; None if none."""
    if cap < unit or total % unit != 0:
        return None
    t = min(int(cap), total)
    t -= t % unit
    while t >= unit and total % t != 0:
        t -= unit
    return t if t >= unit else None


def _choose_c_tile(C, unit, cap):
    """Largest legal channel tile <= cap (multiple of 8 dividing C, or full C).

    Prefers a tile that yields >= 2 channel tiles so the 'parallel' channel
    grid axis can be sharded across both TensorCores on megacore parts (v7x);
    never splits below a full sublane group.
    """
    for u in (unit, 8):
        t = _largest_divisor_tile(C, u, min(cap, C // 2))
        if t is not None:
            return t
    for u in (unit, 8):
        t = _largest_divisor_tile(C, u, cap)
        if t is not None:
            return t
    return C if C <= cap else None


# ---------------------------------------------------------------------------
# Fused single-read kernel: stats + normalize + affine in one pass
# ---------------------------------------------------------------------------
def _fused_kernel(x_ref, g_ref, b_ref, o_ref, *, inv_count, eps):
    # x_ref/o_ref: (N, Ct, HW); g_ref/b_ref: (Ct, 1) f32.
    xf = x_ref[...].astype(jnp.float32)
    # Reduce over batch first (pure VPU adds across slabs), then one cross-lane
    # (XLU) reduce per channel row.
    s = jnp.sum(xf, axis=0)                                      # (Ct, HW)
    mean = jnp.sum(s, axis=-1, keepdims=True) * inv_count        # (Ct, 1)
    xc = xf - mean[None]                                         # (N, Ct, HW)
    sq = jnp.sum(xc * xc, axis=0)                                # (Ct, HW)
    var = jnp.sum(sq, axis=-1, keepdims=True) * inv_count        # (Ct, 1)
    scale = g_ref[...] * jax.lax.rsqrt(var + eps)                # (Ct, 1)
    o_ref[...] = (xc * scale[None] + b_ref[...][None]).astype(o_ref.dtype)


# ---------------------------------------------------------------------------
# Pass 1 (lane-deferred): per-lane Welford accumulation, XLU only at finalize
# ---------------------------------------------------------------------------
def _stats_kernel_lane(x_ref, g_ref, b_ref, scale_ref, shift_ref,
                       mean_acc, m2_acc, *, strips, lane_n, inv_count, eps):
    # x_ref: (1, Ct, hw_tile) with hw_tile == strips*128.
    # mean_acc/m2_acc: (Ct, 128) per-lane Welford state (f32).
    n = pl.program_id(1)
    h = pl.program_id(2)
    num_h = pl.num_programs(2)
    num_n = pl.num_programs(1)
    lin = n * num_h + h                     # linear reduction-step index

    @pl.when(lin == 0)
    def _init():
        mean_acc[...] = jnp.zeros_like(mean_acc)
        m2_acc[...] = jnp.zeros_like(m2_acc)

    base = (lin * strips).astype(jnp.float32)   # elements already seen per lane
    mean = mean_acc[...]
    m2 = m2_acc[...]
    for j in range(strips):                     # static unroll, pure VPU work
        xs = x_ref[0, :, j * 128:(j + 1) * 128].astype(jnp.float32)  # (Ct,128)
        inv = 1.0 / (base + float(j) + 1.0)
        delta = xs - mean
        mean = mean + delta * inv
        m2 = m2 + delta * (xs - mean)           # Welford (numerically stable)
    mean_acc[...] = mean
    m2_acc[...] = m2

    @pl.when(lin == num_n * num_h - 1)
    def _finalize():
        # Combine 128 equal-count per-lane streams: single cross-lane reduce.
        mean_l = mean_acc[...]
        m2_l = m2_acc[...]
        mean_c = jnp.mean(mean_l, axis=-1, keepdims=True)          # (Ct, 1)
        dev = mean_l - mean_c
        m2_c = jnp.sum(m2_l + lane_n * (dev * dev), axis=-1, keepdims=True)
        var = m2_c * inv_count                   # biased variance (training BN)
        scale = g_ref[...] * jax.lax.rsqrt(var + eps)
        scale_ref[...] = scale
        shift_ref[...] = b_ref[...] - mean_c * scale


# ---------------------------------------------------------------------------
# Pass 1 (fallback for HW not a multiple of 128): per-block Chan combine
# ---------------------------------------------------------------------------
def _stats_kernel_block(x_ref, g_ref, b_ref, scale_ref, shift_ref,
                        mean_acc, m2_acc, *, hw_chunk, inv_count, eps):
    # x_ref: (1, Ct, hw_tile); accumulators: (Ct, 1).
    n = pl.program_id(1)
    h = pl.program_id(2)
    num_h = pl.num_programs(2)
    num_n = pl.num_programs(1)
    k = n * num_h + h

    @pl.when(k == 0)
    def _init():
        mean_acc[...] = jnp.zeros_like(mean_acc)
        m2_acc[...] = jnp.zeros_like(m2_acc)

    x = x_ref[0].astype(jnp.float32)                     # (Ct, HWt)
    tile_mean = jnp.mean(x, axis=-1, keepdims=True)      # (Ct, 1)
    xc = x - tile_mean
    tile_m2 = jnp.sum(xc * xc, axis=-1, keepdims=True)   # (Ct, 1)

    # Chan's parallel-variance combine with equal-size chunks of `hw_chunk`.
    kf = k.astype(jnp.float32)
    inv_kp1 = 1.0 / (kf + 1.0)
    delta = tile_mean - mean_acc[...]
    mean_acc[...] = mean_acc[...] + delta * inv_kp1
    m2_acc[...] = m2_acc[...] + tile_m2 + (delta * delta) * (hw_chunk * kf * inv_kp1)

    @pl.when(k == num_n * num_h - 1)
    def _finalize():
        var = m2_acc[...] * inv_count
        scale = g_ref[...] * jax.lax.rsqrt(var + eps)
        scale_ref[...] = scale
        shift_ref[...] = b_ref[...] - mean_acc[...] * scale


# ---------------------------------------------------------------------------
# Pass 2: y = x * scale + shift (streamed, lane-dense output)
# ---------------------------------------------------------------------------
def _apply_kernel(x_ref, scale_ref, shift_ref, o_ref):
    x = x_ref[0].astype(jnp.float32)                       # (Ct, HWt)
    o_ref[0] = (x * scale_ref[...] + shift_ref[...]).astype(o_ref.dtype)


# ---------------------------------------------------------------------------
# Wrapper
# ---------------------------------------------------------------------------
def batchnorm2d_pallas(x_nchw, gamma, beta, *, eps=EPS, force_two_pass=False):
    """Training-mode BatchNorm2d forward. x_nchw: (N, C, H, W)."""
    N, C, H, W = x_nchw.shape
    HW = H * W

    x3 = x_nchw.reshape(N, C, HW)          # free, contiguous reshape
    g2 = gamma.reshape(C, 1).astype(jnp.float32)
    b2 = beta.reshape(C, 1).astype(jnp.float32)

    unit = _sublane_unit(x_nchw.dtype)
    budget = _vmem_budget_bytes()
    inv_count = 1.0 / float(N * HW)

    # ---- fused single-read path (1R + 1W of x) ---------------------------
    if not force_two_pass:
        row_f32 = N * HW * 4                       # f32 bytes per channel row
        c_fused_cap = budget // (_FUSED_WS_FACTOR * row_f32)
        c_tile_f = _choose_c_tile(C, unit, min(256, int(c_fused_cap)))
        if c_tile_f is not None:
            out3 = pl.pallas_call(
                functools.partial(_fused_kernel, inv_count=inv_count, eps=eps),
                out_shape=jax.ShapeDtypeStruct((N, C, HW), x_nchw.dtype),
                grid=(C // c_tile_f,),
                in_specs=[
                    pl.BlockSpec((N, c_tile_f, HW), lambda c: (0, c, 0)),
                    pl.BlockSpec((c_tile_f, 1), lambda c: (c, 0)),
                    pl.BlockSpec((c_tile_f, 1), lambda c: (c, 0)),
                ],
                out_specs=pl.BlockSpec((N, c_tile_f, HW), lambda c: (0, c, 0)),
                compiler_params=pltpu.CompilerParams(
                    dimension_semantics=("parallel",),
                    vmem_limit_bytes=budget),
            )(x3, g2, b2)
            return out3.reshape(N, C, H, W)

    # ---- two-pass streaming path (2R + 1W of x) ---------------------------
    hw_tile = _largest_divisor_tile(HW, 128, _HW_TILE_CAP)
    if hw_tile is None:
        # HW not a multiple of 128: full extent is the only legal lane tile;
        # the channel tile below shrinks to respect the byte budget.
        # TODO(synk): masked partial HW tiles for very large, odd HW.
        hw_tile = HW
    c_cap = min(256, max(8, _TARGET_BLOCK_BYTES // (hw_tile * 4)))
    c_tile = _choose_c_tile(C, unit, c_cap)
    if c_tile is None:
        c_tile = C
    c_tiles = C // c_tile
    hw_tiles = HW // hw_tile

    if hw_tile % 128 == 0:
        stats_kernel = functools.partial(
            _stats_kernel_lane,
            strips=hw_tile // 128,
            lane_n=float(N * HW) / 128.0,
            inv_count=inv_count, eps=eps)
        stats_scratch = [pltpu.VMEM((c_tile, 128), jnp.float32),
                         pltpu.VMEM((c_tile, 128), jnp.float32)]
    else:
        stats_kernel = functools.partial(
            _stats_kernel_block,
            hw_chunk=float(hw_tile), inv_count=inv_count, eps=eps)
        stats_scratch = [pltpu.VMEM((c_tile, 1), jnp.float32),
                         pltpu.VMEM((c_tile, 1), jnp.float32)]

    # pass 1: per-channel scale/shift
    scale, shift = pl.pallas_call(
        stats_kernel,
        out_shape=(jax.ShapeDtypeStruct((C, 1), jnp.float32),
                   jax.ShapeDtypeStruct((C, 1), jnp.float32)),
        grid=(c_tiles, N, hw_tiles),
        in_specs=[
            pl.BlockSpec((1, c_tile, hw_tile), lambda c, n, h: (n, c, h)),
            pl.BlockSpec((c_tile, 1), lambda c, n, h: (c, 0)),
            pl.BlockSpec((c_tile, 1), lambda c, n, h: (c, 0)),
        ],
        out_specs=(
            pl.BlockSpec((c_tile, 1), lambda c, n, h: (c, 0)),
            pl.BlockSpec((c_tile, 1), lambda c, n, h: (c, 0)),
        ),
        scratch_shapes=stats_scratch,
        compiler_params=pltpu.CompilerParams(
            dimension_semantics=("parallel", "arbitrary", "arbitrary"),
            vmem_limit_bytes=budget),
    )(x3, g2, b2)

    # pass 2: normalize + affine
    out3 = pl.pallas_call(
        _apply_kernel,
        out_shape=jax.ShapeDtypeStruct((N, C, HW), x_nchw.dtype),
        grid=(N, c_tiles, hw_tiles),
        in_specs=[
            pl.BlockSpec((1, c_tile, hw_tile), lambda n, c, h: (n, c, h)),
            pl.BlockSpec((c_tile, 1), lambda n, c, h: (c, 0)),
            pl.BlockSpec((c_tile, 1), lambda n, c, h: (c, 0)),
        ],
        out_specs=pl.BlockSpec((1, c_tile, hw_tile), lambda n, c, h: (n, c, h)),
        compiler_params=pltpu.CompilerParams(
            dimension_semantics=("parallel", "parallel", "parallel"),
            vmem_limit_bytes=budget),
    )(x3, scale, shift)

    return out3.reshape(N, C, H, W)


# ---------------------------------------------------------------------------
# Module mirror
# ---------------------------------------------------------------------------
class SwitchableBatchNorm2dPallas:
    """Mirror of utils/SwitchBlock.py::SwitchableBatchNorm2d (forward only)."""

    def __init__(self, num_channels_list, width_mult_list, key):
        self.num_channels_list = num_channels_list
        self.width_mult_list = width_mult_list
        self.width_mult = max(width_mult_list)
        # One (gamma, beta) pair per width. PyTorch default init is weight=1,
        # bias=0; we perturb deterministically so the affine path is exercised.
        self.params = []
        for c in num_channels_list:
            key, kg, kb = jax.random.split(key, 3)
            gamma = 1.0 + 0.1 * jax.random.normal(kg, (c,), jnp.float32)
            beta = 0.1 * jax.random.normal(kb, (c,), jnp.float32)
            self.params.append((gamma, beta))

    def __call__(self, x):
        idx = self.width_mult_list.index(self.width_mult)
        gamma, beta = self.params[idx]
        assert x.shape[1] == self.num_channels_list[idx]
        return batchnorm2d_pallas(x, gamma, beta)


# ---------------------------------------------------------------------------
# Reference + test
# ---------------------------------------------------------------------------
def _reference(x, gamma, beta):
    xf = x.astype(jnp.float32)
    mean = jnp.mean(xf, axis=(0, 2, 3), keepdims=True)
    var = jnp.mean((xf - mean) ** 2, axis=(0, 2, 3), keepdims=True)
    y = (xf - mean) / jnp.sqrt(var + EPS)
    return y * gamma.reshape(1, -1, 1, 1) + beta.reshape(1, -1, 1, 1)


if __name__ == "__main__":
    key = jax.random.PRNGKey(0)
    key, kx, kp = jax.random.split(key, 3)

    num_channels_list = [1, 2, 3, 4]          # channels per width multiplier
    N, C, H, W = 2, 4, 16, 16                 # active width = 1.0 -> C = 4
    x = jax.random.normal(kx, (N, C, H, W), jnp.float32)

    module = SwitchableBatchNorm2dPallas(num_channels_list, width_mult_list, kp)
    out = jax.block_until_ready(module(x))

    idx = module.width_mult_list.index(module.width_mult)
    gamma, beta = module.params[idx]
    ref = _reference(x, gamma, beta)
    assert out.shape == (N, C, H, W)
    assert jnp.allclose(out, ref, atol=1e-4, rtol=1e-4)

    # Also exercise the streaming two-pass paths (lane-deferred Welford path
    # and the non-128-multiple-HW fallback), plus the fused path on the same
    # shapes, all at small sizes.
    key, k1, kg, kb = jax.random.split(key, 4)
    for shape in [(4, 16, 32, 32), (2, 16, 10, 10)]:
        n_, c_, h_, w_ = shape
        xs = 1.5 + 3.0 * jax.random.normal(k1, shape, jnp.float32)
        g = 1.0 + 0.1 * jax.random.normal(kg, (c_,), jnp.float32)
        b = 0.1 * jax.random.normal(kb, (c_,), jnp.float32)
        ref_s = _reference(xs, g, b)
        y_two = jax.block_until_ready(
            batchnorm2d_pallas(xs, g, b, force_two_pass=True))
        assert jnp.allclose(y_two, ref_s, atol=1e-4, rtol=1e-4)
        y_fused = jax.block_until_ready(batchnorm2d_pallas(xs, g, b))
        assert jnp.allclose(y_fused, ref_s, atol=1e-4, rtol=1e-4)

    print("KERNEL_OK")
</pallas_src>

<mosaic_0001>
module attributes {stable_mosaic.version = 11 : i64} {
  func.func @_fused_kernel(%arg0: i32, %arg1: memref<2x4x256xf32, #tpu.memory_space<vmem>>, %arg2: memref<4x1xf32, #tpu.memory_space<vmem>>, %arg3: memref<4x1xf32, #tpu.memory_space<vmem>>, %arg4: memref<2x4x256xf32, #tpu.memory_space<vmem>>) attributes {dimension_semantics = [#tpu.dimension_semantics<parallel>], iteration_bounds = array<i64: 1>, scalar_prefetch = 0 : i64, scratch_operands = 0 : i64, tpu.core_type = #tpu.core_type<tc>, window_params = [{transform_indices = @transform_0, window_bounds = array<i64: 2, 4, 256>}, {transform_indices = @transform_1, window_bounds = array<i64: 4, 1>}, {transform_indices = @transform_2, window_bounds = array<i64: 4, 1>}, {transform_indices = @transform_3, window_bounds = array<i64: 2, 4, 256>}]} {
    %c0 = arith.constant 0 : index
    %c0_0 = arith.constant 0 : index
    %c0_1 = arith.constant 0 : index
    %0 = vector.load %arg1[%c0, %c0_0, %c0_1] : memref<2x4x256xf32, #tpu.memory_space<vmem>>, vector<2x4x256xf32>
    %cst = arith.constant dense<0.000000e+00> : vector<4x256xf32>
    %1 = vector.multi_reduction <add>, %0, %cst [0] : vector<2x4x256xf32> to vector<4x256xf32>
    %cst_2 = arith.constant dense<0.000000e+00> : vector<4xf32>
    %2 = vector.multi_reduction <add>, %1, %cst_2 [1] : vector<4x256xf32> to vector<4xf32>
    %3 = vector.shape_cast %2 : vector<4xf32> to vector<4x1xf32>
    %cst_3 = arith.constant 0.001953125 : f32
    %4 = vector.broadcast %cst_3 : f32 to vector<4x1xf32>
    %5 = arith.mulf %3, %4 : vector<4x1xf32>
    %6 = vector.shape_cast %5 : vector<4x1xf32> to vector<1x4x1xf32>
    %7 = vector.broadcast %6 : vector<1x4x1xf32> to vector<2x4x256xf32>
    %8 = arith.subf %0, %7 : vector<2x4x256xf32>
    %9 = arith.mulf %8, %8 : vector<2x4x256xf32>
    %cst_4 = arith.constant dense<0.000000e+00> : vector<4x256xf32>
    %10 = vector.multi_reduction <add>, %9, %cst_4 [0] : vector<2x4x256xf32> to vector<4x256xf32>
    %cst_5 = arith.constant dense<0.000000e+00> : vector<4xf32>
    %11 = vector.multi_reduction <add>, %10, %cst_5 [1] : vector<4x256xf32> to vector<4xf32>
    %12 = vector.shape_cast %11 : vector<4xf32> to vector<4x1xf32>
    %cst_6 = arith.constant 0.001953125 : f32
    %13 = vector.broadcast %cst_6 : f32 to vector<4x1xf32>
    %14 = arith.mulf %12, %13 : vector<4x1xf32>
    %c0_7 = arith.constant 0 : index
    %c0_8 = arith.constant 0 : index
    %15 = vector.load %arg2[%c0_7, %c0_8] : memref<4x1xf32, #tpu.memory_space<vmem>>, vector<4x1xf32>
    %cst_9 = arith.constant 9.99999974E-6 : f32
    %16 = vector.broadcast %cst_9 : f32 to vector<4x1xf32>
    %17 = arith.addf %14, %16 : vector<4x1xf32>
    %18 = math.rsqrt %17 : vector<4x1xf32>
    %19 = arith.mulf %15, %18 : vector<4x1xf32>
    %20 = vector.shape_cast %19 : vector<4x1xf32> to vector<1x4x1xf32>
    %21 = vector.broadcast %20 : vector<1x4x1xf32> to vector<2x4x256xf32>
    %22 = arith.mulf %8, %21 : vector<2x4x256xf32>
    %c0_10 = arith.constant 0 : index
    %c0_11 = arith.constant 0 : index
    %23 = vector.load %arg3[%c0_10, %c0_11] : memref<4x1xf32, #tpu.memory_space<vmem>>, vector<4x1xf32>
    %24 = vector.shape_cast %23 : vector<4x1xf32> to vector<1x4x1xf32>
    %25 = vector.broadcast %24 : vector<1x4x1xf32> to vector<2x4x256xf32>
    %26 = arith.addf %22, %25 : vector<2x4x256xf32>
    %c0_12 = arith.constant 0 : index
    %c0_13 = arith.constant 0 : index
    %c0_14 = arith.constant 0 : index
    %27 = vector.load %arg4[%c0_12, %c0_13, %c0_14] : memref<2x4x256xf32, #tpu.memory_space<vmem>>, vector<2x4x256xf32>
    tpu.vector_store %arg4[%c0_12, %c0_13, %c0_14], %26 {strides = array<i32>} : memref<2x4x256xf32, #tpu.memory_space<vmem>>, vector<2x4x256xf32>,
    return
  }
  func.func @transform_0(%arg0: i32) -> (i32, i32, i32) {
    %c0_i32 = arith.constant 0 : i32
    %c0_i32_0 = arith.constant 0 : i32
    %c0_i32_1 = arith.constant 0 : i32
    return %c0_i32, %arg0, %c0_i32_0 : i32, i32, i32
  }
  func.func @transform_1(%arg0: i32) -> (i32, i32) {
    %c0_i32 = arith.constant 0 : i32
    %c0_i32_0 = arith.constant 0 : i32
    return %arg0, %c0_i32 : i32, i32
  }
  func.func @transform_2(%arg0: i32) -> (i32, i32) {
    %c0_i32 = arith.constant 0 : i32
    %c0_i32_0 = arith.constant 0 : i32
    return %arg0, %c0_i32 : i32, i32
  }
  func.func @transform_3(%arg0: i32) -> (i32, i32, i32) {
    %c0_i32 = arith.constant 0 : i32
    %c0_i32_0 = arith.constant 0 : i32
    %c0_i32_1 = arith.constant 0 : i32
    return %c0_i32, %arg0, %c0_i32_0 : i32, i32, i32
  }
}

</mosaic_0001>

<llo_original>
// kernel: tpu_custom_call.1
$region0: #{tpu_custom_call.1}
  #allocation0 [shape = 'u32[]', space=smem, size = 0x4, offset = 0x4, fixed_abs, tag = 'smem constant byte address 0x4 - core index']
  #allocation1 [shape = 'u32[144,128]{1,0:T(1,128)}', space=vmem, size = 0x12000, scoped, tag = 'internal scratch']
  %s0 = inlined_call_operand.hbm [shape: f32[2,4,256], index: 0, kind: input, shape index: {}]
  %s1 = inlined_call_operand.vmem [shape: f32[4,1], index: 1, kind: input, shape index: {}]
  %s2 = inlined_call_operand.vmem [shape: f32[4,1], index: 2, kind: input, shape index: {}]
  %s3 = inlined_call_operand.hbm [shape: f32[2,4,256], index: 3, kind: output, shape index: {}]
  %s4 = sld [smem:[#allocation0]]
  $region26: #{tpu_custom_call.1} parent=0
    _
  %s6 = ssub.s32 1, %s4
  %s7 = scalar_select 0, %s6, %s4
  $region1: #{tpu_custom_call.1} parent=0
    #allocation2 [shape = 'u8[8192]{0}', space=vmem, size = 0x2000, scoped, tag = 'input window, operand 0, single buffered']
    #allocation3 [shape = 's32[1]{0}', space=sflag, size = 0x4, scoped, tag = 'scoped memory for tpu_custom_call.1']
    #allocation4 [shape = 's32[1]{0}', space=sflag, size = 0x4, scoped, tag = 'scoped memory for tpu_custom_call.1']
    #allocation5 [shape = 'u8[8192]{0}', space=vmem, size = 0x2000, scoped, tag = 'output window, operand 0, single buffered']
    %8 = vsyncpa [#allocation3], 0
    %9 = vsyncpa [#allocation4], 0
    // Predicated region
    $region2: #{tpu_custom_call.1} parent=1 // pred_check
      _
    $region3: #{tpu_custom_call.1} parent=1 // pred_check_branch
      %11 = sbr.rel (0) target = $region5
    $region4: #{tpu_custom_call.1} parent=1 // pred_region
      %s13 = ssub.s32 256, 256
      %14 = vsyncadd [#allocation3], %s13
      %s15 = sshll.u32 [#allocation2], 4
      %s16 = int_to_ptr.vmem [resolvable:$true] %s15
      %21 = dma.hbm_to_vmem [thread:$0]  %s0, 256, %s16, [#allocation3], 128, 128, 8
    $region5: #{tpu_custom_call.1} parent=1 // pred_fallthru
      _
    // Predicated region
    $region6: #{tpu_custom_call.1} parent=1 // pred_check
      _
    $region7: #{tpu_custom_call.1} parent=1 // pred_check_branch
      %23 = sbr.rel (0) target = $region9
    $region8: #{tpu_custom_call.1} parent=1 // pred_region
      _
    $region9: #{tpu_custom_call.1} parent=1 // pred_fallthru
      _
    // Predicated region
    $region10: #{tpu_custom_call.1} parent=1 // pred_check
      _
    $region11: #{tpu_custom_call.1} parent=1 // pred_check_branch
      %25 = sbr.rel (0) target = $region13
    $region12: #{tpu_custom_call.1} parent=1 // pred_region
      _
    $region13: #{tpu_custom_call.1} parent=1 // pred_fallthru
      _
    // Predicated region
    $region14: #{tpu_custom_call.1} parent=1 // pred_check
      _
    $region15: #{tpu_custom_call.1} parent=1 // pred_check_branch
      %27 = sbr.rel (0) target = $region17
    $region16: #{tpu_custom_call.1} parent=1 // pred_region
      %28 = dma.done [#allocation3], 256
    $region17: #{tpu_custom_call.1} parent=1 // pred_fallthru
      _
    %v29 = vld [vmem:[#allocation2] sm:$0xff]
    %v30 = vld [vmem:[#allocation2 + $0x8] sm:$0xff]
    %v33 = vcombine.high %v29, %v29
    %v34 = vcombine.high %v30, %v30
    %vm37 = vcmask 1043456
    %v38 = vsel %vm37, %v29, 0.0
    %v39 = vsel %vm37, %v30, 0.0
    %v40 = vadd.f32 %v38, %v39
    %v41 = vsel %vm37, %v33, 0.0
    %v42 = vsel %vm37, %v34, 0.0
    %v43 = vadd.f32 %v41, %v42
    %v44 = vsel %vm37, %v40, 0.0
    %v45 = vsel %vm37, %v43, 0.0
    %v46 = vadd.f32 %v44, %v45
    %47 = vadd.xlane.f32.xlu0 %v46
    %v48 = vpop.xlane.xlu0 %47
    %v49 = vmul.f32 %v48, 0.001953125
    %v52 = vunpack.c.l.s4 839922192
    %v53 = vunpack.c.0.s8 %v52
    %v54 = vlaneseq
    %v55 = vshrl.u32 %v54, 7
    %v56 = vsub.s32 %v53, %v55
    %v57 = vrot.slane %v49, %v56
    %v59 = vsub.f32 %v29, %v57
    %v60 = vsub.f32 %v30, %v57
    %v61 = vmul.f32 %v59, %v59
    %v62 = vmul.f32 %v60, %v60
    %v65 = vcombine.high %v61, %v61
    %v66 = vcombine.high %v62, %v62
    %v69 = vsel %vm37, %v61, 0.0
    %v70 = vsel %vm37, %v62, 0.0
    %v71 = vadd.f32 %v69, %v70
    %v72 = vsel %vm37, %v65, 0.0
    %v73 = vsel %vm37, %v66, 0.0
    %v74 = vadd.f32 %v72, %v73
    %v75 = vsel %vm37, %v71, 0.0
    %v76 = vsel %vm37, %v74, 0.0
    %v77 = vadd.f32 %v75, %v76
    %78 = vadd.xlane.f32.xlu0 %v77
    %v79 = vpop.xlane.xlu0 %78
    %v80 = vmul.f32 %v79, 0.001953125
    %v81 = vld [vmem:[%s1] sm:$0xf]
    %v82 = vadd.f32 %v80, 1e-05
    %v83 = vrsqrt.pop %v82
    %v84 = vmul.f32 %v81, %v83
    %86 = vset.pattern.permute.xlu0 0
    %87 = vperm.xlu0 %86, %v84
    %v88 = vpop.permute.xlu0 %87
    %v90 = vunpack.c.l.s4 839922192
    %v91 = vunpack.c.0.s8 %v90
    %v92 = vlaneseq
    %v93 = vshrl.u32 %v92, 7
    %v94 = vsub.s32 %v91, %v93
    %v95 = vrot.slane %v88, %v94
    %v97 = vmul.f32 %v59, %v95
    %v98 = vmul.f32 %v60, %v95
    %v99 = vld [vmem:[%s2] sm:$0xf]
    %101 = vset.pattern.permute.xlu0 0
    %102 = vperm.xlu0 %101, %v99
    %v103 = vpop.permute.xlu0 %102
    %v105 = vunpack.c.l.s4 839922192
    %v106 = vunpack.c.0.s8 %v105
    %v107 = vlaneseq
    %v108 = vshrl.u32 %v107, 7
    %v109 = vsub.s32 %v106, %v108
    %v110 = vrot.slane %v103, %v109
    %v112 = vadd.f32 %v97, %v110
    %v113 = vadd.f32 %v98, %v110
    %114 = vst [vmem:[#allocation5] sm:$0xff] %v112
    %115 = vst [vmem:[#allocation5 + $0x8] sm:$0xff] %v113
    // Predicated region
    $region18: #{tpu_custom_call.1} parent=1 // pred_check
      _
    $region19: #{tpu_custom_call.1} parent=1 // pred_check_branch
      %117 = sbr.rel (0) target = $region21
    $region20: #{tpu_custom_call.1} parent=1 // pred_region
      %s119 = ssub.s32 256, 256
      %120 = vsyncadd [#allocation4], %s119
      %s121 = sshll.u32 [#allocation5], 4
      %s122 = int_to_ptr.vmem [resolvable:$true] %s121
      %127 = dma.vmem_to_hbm [thread:$0]  %s122, 256, %s3, [#allocation4], 128, 128, 8
    $region21: #{tpu_custom_call.1} parent=1 // pred_fallthru
      _
    // Predicated region
    $region22: #{tpu_custom_call.1} parent=1 // pred_check
      _
    $region23: #{tpu_custom_call.1} parent=1 // pred_check_branch
      %129 = sbr.rel (0) target = $region25
    $region24: #{tpu_custom_call.1} parent=1 // pred_region
      %130 = dma.done [#allocation4], 256
    $region25: #{tpu_custom_call.1} parent=1 // pred_fallthru
      _
    %131 = vsyncpa [#allocation3], 1
    %132 = vsyncpa [#allocation4], 1

</llo_original>
